<compile_context>
chip_gen: v5e
topology: v5e:2x2
jax: 0.10.0
libtpu: 0.0.40
codegen_flags: <defaults>
</compile_context>

<pallas_src>
import functools

import jax
import jax.numpy as jnp
from jax.experimental import pallas as pl
from jax.experimental.pallas import tpu as pltpu


def _channel_attention_kernel(x_ref, w1_ref, w2_ref, out_ref,
                              sum_acc, max_acc, *, s_total, s_tile):
    """One (batch-tile, spatial-tile) grid step.

    x_ref:   (Bt, C, St) native dtype (spatial tile of the flattened H*W axis)
    w1_ref:  (C, Ch)     f32, VMEM-resident across the whole grid
    w2_ref:  (Ch, C)     f32
    out_ref: (Bt, 1, C)  f32, written only on the last spatial step
    sum_acc: (Bt, C)     f32 scratch, running spatial sum
    max_acc: (Bt, C)     f32 scratch, running spatial max
    """
    s = pl.program_id(1)
    ns = pl.num_programs(1)
    rem = s_total % s_tile            # static: ragged-tail length (0 = none)

    @pl.when(s == 0)
    def _init():
        sum_acc[...] = jnp.zeros_like(sum_acc)
        max_acc[...] = jnp.full_like(max_acc, -jnp.inf)

    def _accumulate(masked):
        # Per-tile upcast (free: VPU slot has slack in this mem-bound kernel).
        x = x_ref[...].astype(jnp.float32)                   # (Bt, C, St)
        if masked:
            # Last tile only: mask padding lanes (0 for sum, -inf for max).
            # Narrow (1, 1, St) iota; the comparison bound is static.
            lane = jax.lax.broadcasted_iota(jnp.int32, (1, 1, s_tile), 2)
            valid = lane < rem
            x_sum = jnp.where(valid, x, 0.0)
            x_max = jnp.where(valid, x, -jnp.inf)
        else:
            x_sum = x
            x_max = x
        # Lane reductions go to the XLU; accumulate in f32 scratch.
        sum_acc[...] += jnp.sum(x_sum, axis=-1)
        max_acc[...] = jnp.maximum(max_acc[...], jnp.max(x_max, axis=-1))

    def _finalize():
        avg = sum_acc[...] * (1.0 / s_total)   # divide once, outside hot loop
        mx = max_acc[...]
        # Shared MLP, using mlp(a)+mlp(m) = (relu(a@W1) + relu(m@W1)) @ W2
        # (no concat / slice relayout in the epilogue).
        h = (jnp.maximum(jnp.dot(avg, w1_ref[...],
                                 preferred_element_type=jnp.float32), 0.0) +
             jnp.maximum(jnp.dot(mx, w1_ref[...],
                                 preferred_element_type=jnp.float32), 0.0))
        logits = jnp.dot(h, w2_ref[...], preferred_element_type=jnp.float32)
        out_ref[...] = jax.nn.sigmoid(logits)[:, None, :].astype(out_ref.dtype)

    if rem == 0:
        # Tail-free tiling: no masking anywhere.
        _accumulate(masked=False)

        @pl.when(s == ns - 1)
        def _last():
            _finalize()
    else:
        # Ragged tail: the mask is built only on the last spatial step.
        @pl.when(s < ns - 1)
        def _hot():
            _accumulate(masked=False)

        @pl.when(s == ns - 1)
        def _last():
            _accumulate(masked=True)
            _finalize()


def channel_attention(x, w1_conv, w2_conv, *, spatial_tile=None,
                      spatial_tile_bytes=8 << 20):
    """x: (B, C, H, W) NCHW. w1_conv: (C//r, C, 1, 1). w2_conv: (C, C//r, 1, 1).

    Returns (B, C, 1, 1) in x.dtype, matching the PyTorch module output.
    """
    B, C, H, W = x.shape
    S = H * W
    Ch = w1_conv.shape[0]
    itemsize = jnp.dtype(x.dtype).itemsize

    # Keep x in its native dtype; only flatten the spatial dims.
    # NOTE(small C): C < 8 sublane-pads each (C, st) tile; HBM traffic is
    # unchanged so we accept the padding rather than re-layout to (B*C, S).
    x3 = x.reshape(B, C, S)
    # 1x1 convs as dense matmul weights (tiny; f32, VMEM-resident).
    w1 = w1_conv.reshape(Ch, C).T.astype(jnp.float32)   # (C, Ch): pooled @ w1
    w2 = w2_conv.reshape(C, Ch).T.astype(jnp.float32)   # (Ch, C): hidden @ w2

    # Batch tile.  Split small batches in two so the "parallel" batch axis has
    # >= 2 grid iterations (keeps both v7x TensorCores streaming x).
    if B == 1:
        bt = 1
    elif B <= 8:
        bt = pl.cdiv(B, 2)
    else:
        bt = 8
    nb = pl.cdiv(B, bt)
    # When bt does not divide B, the padded batch rows carry garbage through
    # the finalize MLP.  Rows are independent and the out-of-bounds part of
    # the output block is dropped, so valid rows are unaffected (intentional).

    # Spatial tile: lane-aligned (multiple of 128 or full extent), per-row
    # contiguous DMA length >= ~1 KiB, ~spatial_tile_bytes per pipeline
    # buffer, preferring a tail-free divisor of S so the hot loop never masks.
    row_floor = max(128, ((1024 + itemsize - 1) // itemsize + 127) // 128 * 128)
    if spatial_tile is not None:
        st = spatial_tile
        if st != S and st % 128 != 0:
            st = max(128, (st // 128) * 128)         # keep (8,128) lane rule
        if st != S:
            st = min(st, pl.cdiv(S, 128) * 128)
    elif S <= max(512, row_floor):
        st = S                                       # full extent (always legal)
    else:
        budget = spatial_tile_bytes // (bt * C * itemsize)
        st = max(row_floor, (budget // 128) * 128)
        st = min(st, pl.cdiv(S, 128) * 128)
        if S % st != 0:
            # Look for a tail-free tile not much smaller than the byte target.
            lo = max(row_floor, (st // 2 // 128) * 128, 128)
            for cand in range(st - 128, lo - 1, -128):
                if S % cand == 0:
                    st = cand
                    break
    ns = pl.cdiv(S, st)

    kernel = functools.partial(_channel_attention_kernel, s_total=S, s_tile=st)

    # Derive the scoped-VMEM limit from actual usage (double-buffered input
    # and output blocks, resident weights, scratch) plus slack; fits v7x's
    # 64 MiB with headroom while lifting v5e's 16 MiB scoped default.
    x_block_bytes = bt * C * st * itemsize
    w_bytes = 2 * C * Ch * 4
    out_block_bytes = bt * C * 4
    scratch_bytes = 2 * bt * C * 4
    vmem_limit = int(2 * x_block_bytes + 2 * w_bytes + 2 * out_block_bytes +
                     scratch_bytes + (4 << 20))
    vmem_limit = max(vmem_limit, 24 << 20)

    # Advisory cost: purely HBM-bandwidth bound on x.
    bytes_accessed = B * C * S * itemsize + 2 * C * Ch * 4 + B * C * 4
    cost = pl.CostEstimate(flops=6 * B * C * Ch,
                           transcendentals=B * C,
                           bytes_accessed=bytes_accessed)

    out = pl.pallas_call(
        kernel,
        out_shape=jax.ShapeDtypeStruct((B, 1, C), jnp.float32),
        grid_spec=pltpu.PrefetchScalarGridSpec(
            num_scalar_prefetch=0,
            grid=(nb, ns),
            in_specs=[
                pl.BlockSpec((bt, C, st), lambda b, s: (b, 0, s)),
                pl.BlockSpec((C, Ch), lambda b, s: (0, 0)),   # weights resident
                pl.BlockSpec((Ch, C), lambda b, s: (0, 0)),
            ],
            out_specs=pl.BlockSpec((bt, 1, C), lambda b, s: (b, 0, 0)),
            scratch_shapes=[
                pltpu.VMEM((bt, C), jnp.float32),   # running sum
                pltpu.VMEM((bt, C), jnp.float32),   # running max
            ],
        ),
        compiler_params=pltpu.CompilerParams(
            dimension_semantics=("parallel", "arbitrary"),
            vmem_limit_bytes=vmem_limit,
        ),
        cost_estimate=cost,
    )(x3, w1, w2)

    return out.reshape(B, C, 1, 1).astype(x.dtype)


def channel_attention_ref(x, w1_conv, w2_conv):
    """Pure-JAX reference mirroring the PyTorch forward."""
    B, C, H, W = x.shape
    Ch = w1_conv.shape[0]
    w1 = w1_conv.reshape(Ch, C).astype(jnp.float32)
    w2 = w2_conv.reshape(C, Ch).astype(jnp.float32)
    xf = x.astype(jnp.float32)
    avg = jnp.mean(xf, axis=(2, 3))          # (B, C)
    mx = jnp.max(xf, axis=(2, 3))            # (B, C)

    def mlp(p):
        return jnp.maximum(p @ w1.T, 0.0) @ w2.T

    return jax.nn.sigmoid(mlp(avg) + mlp(mx)).reshape(B, C, 1, 1)


if __name__ == "__main__":
    key = jax.random.PRNGKey(0)
    ratio = 4

    # --- Test 1: small CBAM shape, single grid step (St == S) ---------------
    B, C, H, W = 2, 4, 16, 16
    Ch = C // ratio
    kx, k1, k2, key = jax.random.split(key, 4)
    x = jax.random.normal(kx, (B, C, H, W), dtype=jnp.float32)
    w1_conv = jax.random.normal(k1, (Ch, C, 1, 1), dtype=jnp.float32) * 0.5
    w2_conv = jax.random.normal(k2, (C, Ch, 1, 1), dtype=jnp.float32) * 0.5

    out = jax.block_until_ready(channel_attention(x, w1_conv, w2_conv))
    ref = channel_attention_ref(x, w1_conv, w2_conv)
    assert out.shape == (B, C, 1, 1)
    assert jnp.allclose(out, ref, atol=1e-5, rtol=1e-5), "test1 mismatch"

    # --- Test 2: multi-tile spatial reduction with a masked ragged tail -----
    B2, C2, H2, W2 = 2, 8, 20, 20            # S = 400 = 3*128 + 16
    Ch2 = C2 // ratio
    kx, k1, k2, key = jax.random.split(key, 4)
    x2 = jax.random.normal(kx, (B2, C2, H2, W2), dtype=jnp.float32)
    w1c2 = jax.random.normal(k1, (Ch2, C2, 1, 1), dtype=jnp.float32) * 0.5
    w2c2 = jax.random.normal(k2, (C2, Ch2, 1, 1), dtype=jnp.float32) * 0.5

    out2 = jax.block_until_ready(
        channel_attention(x2, w1c2, w2c2, spatial_tile=128))
    ref2 = channel_attention_ref(x2, w1c2, w2c2)
    assert out2.shape == (B2, C2, 1, 1)
    assert jnp.allclose(out2, ref2, atol=1e-5, rtol=1e-5), "test2 mismatch"

    # --- Test 3: tail-free multi-tile path + uneven batch tiling ------------
    B3, C3, H3, W3 = 5, 16, 32, 32           # S = 1024, bt=3 -> padded rows
    Ch3 = C3 // ratio
    kx, k1, k2, key = jax.random.split(key, 4)
    x3 = jax.random.normal(kx, (B3, C3, H3, W3), dtype=jnp.float32)
    w1c3 = jax.random.normal(k1, (Ch3, C3, 1, 1), dtype=jnp.float32) * 0.5
    w2c3 = jax.random.normal(k2, (C3, Ch3, 1, 1), dtype=jnp.float32) * 0.5

    out3 = jax.block_until_ready(
        channel_attention(x3, w1c3, w2c3, spatial_tile=256))
    ref3 = channel_attention_ref(x3, w1c3, w2c3)
    assert out3.shape == (B3, C3, 1, 1)
    assert jnp.allclose(out3, ref3, atol=1e-5, rtol=1e-5), "test3 mismatch"

    # --- Test 4: native bf16 input through the default tiling heuristic -----
    B4, C4, H4, W4 = 4, 16, 24, 24           # S = 576
    Ch4 = C4 // ratio
    kx, k1, k2, key = jax.random.split(key, 4)
    x4 = jax.random.normal(kx, (B4, C4, H4, W4), dtype=jnp.float32)
    x4 = x4.astype(jnp.bfloat16)
    w1c4 = jax.random.normal(k1, (Ch4, C4, 1, 1), dtype=jnp.float32) * 0.5
    w2c4 = jax.random.normal(k2, (C4, Ch4, 1, 1), dtype=jnp.float32) * 0.5

    out4 = jax.block_until_ready(channel_attention(x4, w1c4, w2c4))
    ref4 = channel_attention_ref(x4, w1c4, w2c4)
    assert out4.shape == (B4, C4, 1, 1)
    assert jnp.allclose(out4.astype(jnp.float32), ref4,
                        atol=1e-2, rtol=1e-2), "test4 mismatch"

    print("KERNEL_OK")
</pallas_src>

<mosaic_0001>
module attributes {stable_mosaic.version = 11 : i64} {
  func.func @_channel_attention_kernel(%arg0: i32, %arg1: i32, %arg2: memref<1x4x256xf32, #tpu.memory_space<vmem>>, %arg3: memref<4x1xf32, #tpu.memory_space<vmem>>, %arg4: memref<1x4xf32, #tpu.memory_space<vmem>>, %arg5: memref<1x1x4xf32, #tpu.memory_space<vmem>>, %arg6: memref<1x4xf32, #tpu.memory_space<vmem>>, %arg7: memref<1x4xf32, #tpu.memory_space<vmem>>) attributes {dimension_semantics = [#tpu.dimension_semantics<parallel>, #tpu.dimension_semantics<arbitrary>], iteration_bounds = array<i64: 2, 1>, scalar_prefetch = 0 : i64, scratch_operands = 2 : i64, tpu.core_type = #tpu.core_type<tc>, window_params = [{transform_indices = @transform_0, window_bounds = array<i64: 1, 4, 256>}, {pipeline_mode = #tpu.pipeline_mode<synchronous>, transform_indices = @transform_1, window_bounds = array<i64: 4, 1>}, {pipeline_mode = #tpu.pipeline_mode<synchronous>, transform_indices = @transform_2, window_bounds = array<i64: 1, 4>}, {transform_indices = @transform_3, window_bounds = array<i64: 1, 1, 4>}]} {
    %c0_i32 = arith.constant 0 : i32
    %0 = arith.cmpi eq, %arg1, %c0_i32 : i32
    %1 = arith.extui %0 : i1 to i32
    %c0_i32_0 = arith.constant 0 : i32
    %2 = arith.cmpi ne, %1, %c0_i32_0 : i32
    scf.if %2 {
      %cst_14 = arith.constant 0.000000e+00 : f32
      %15 = vector.broadcast %cst_14 : f32 to vector<1x4xf32>
      %c0_15 = arith.constant 0 : index
      %c0_16 = arith.constant 0 : index
      %16 = vector.load %arg6[%c0_15, %c0_16] : memref<1x4xf32, #tpu.memory_space<vmem>>, vector<1x4xf32>
      tpu.vector_store %arg6[%c0_15, %c0_16], %15 {strides = array<i32>} : memref<1x4xf32, #tpu.memory_space<vmem>>, vector<1x4xf32>,
      %cst_17 = arith.constant 0xFF800000 : f32
      %17 = vector.broadcast %cst_17 : f32 to vector<1x4xf32>
      %c0_18 = arith.constant 0 : index
      %c0_19 = arith.constant 0 : index
      %18 = vector.load %arg7[%c0_18, %c0_19] : memref<1x4xf32, #tpu.memory_space<vmem>>, vector<1x4xf32>
      tpu.vector_store %arg7[%c0_18, %c0_19], %17 {strides = array<i32>} : memref<1x4xf32, #tpu.memory_space<vmem>>, vector<1x4xf32>,
    } else {
    }
    %c0 = arith.constant 0 : index
    %c0_1 = arith.constant 0 : index
    %c0_2 = arith.constant 0 : index
    %3 = vector.load %arg2[%c0, %c0_1, %c0_2] : memref<1x4x256xf32, #tpu.memory_space<vmem>>, vector<1x4x256xf32>
    %c0_3 = arith.constant 0 : index
    %c0_4 = arith.constant 0 : index
    %4 = vector.load %arg6[%c0_3, %c0_4] : memref<1x4xf32, #tpu.memory_space<vmem>>, vector<1x4xf32>
    %cst = arith.constant dense<0.000000e+00> : vector<1x4xf32>
    %5 = vector.multi_reduction <add>, %3, %cst [2] : vector<1x4x256xf32> to vector<1x4xf32>
    %6 = arith.addf %4, %5 : vector<1x4xf32>
    %c0_5 = arith.constant 0 : index
    %c0_6 = arith.constant 0 : index
    %7 = vector.load %arg6[%c0_5, %c0_6] : memref<1x4xf32, #tpu.memory_space<vmem>>, vector<1x4xf32>
    tpu.vector_store %arg6[%c0_5, %c0_6], %6 {strides = array<i32>} : memref<1x4xf32, #tpu.memory_space<vmem>>, vector<1x4xf32>,
    %c0_7 = arith.constant 0 : index
    %c0_8 = arith.constant 0 : index
    %8 = vector.load %arg7[%c0_7, %c0_8] : memref<1x4xf32, #tpu.memory_space<vmem>>, vector<1x4xf32>
    %cst_9 = arith.constant dense<0xFF800000> : vector<1x4xf32>
    %9 = vector.multi_reduction <maximumf>, %3, %cst_9 [2] : vector<1x4x256xf32> to vector<1x4xf32>
    %10 = arith.maximumf %8, %9 : vector<1x4xf32>
    %c0_10 = arith.constant 0 : index
    %c0_11 = arith.constant 0 : index
    %11 = vector.load %arg7[%c0_10, %c0_11] : memref<1x4xf32, #tpu.memory_space<vmem>>, vector<1x4xf32>
    tpu.vector_store %arg7[%c0_10, %c0_11], %10 {strides = array<i32>} : memref<1x4xf32, #tpu.memory_space<vmem>>, vector<1x4xf32>,
    %c0_i32_12 = arith.constant 0 : i32
    %12 = arith.cmpi eq, %arg1, %c0_i32_12 : i32
    %13 = arith.extui %12 : i1 to i32
    %c0_i32_13 = arith.constant 0 : i32
    %14 = arith.cmpi ne, %13, %c0_i32_13 : i32
    scf.if %14 {
      %c0_14 = arith.constant 0 : index
      %c0_15 = arith.constant 0 : index
      %15 = vector.load %arg6[%c0_14, %c0_15] : memref<1x4xf32, #tpu.memory_space<vmem>>, vector<1x4xf32>
      %cst_16 = arith.constant 3.906250e-03 : f32
      %16 = vector.broadcast %cst_16 : f32 to vector<1x4xf32>
      %17 = arith.mulf %15, %16 : vector<1x4xf32>
      %c0_17 = arith.constant 0 : index
      %c0_18 = arith.constant 0 : index
      %18 = vector.load %arg7[%c0_17, %c0_18] : memref<1x4xf32, #tpu.memory_space<vmem>>, vector<1x4xf32>
      %c0_19 = arith.constant 0 : index
      %c0_20 = arith.constant 0 : index
      %19 = vector.load %arg3[%c0_19, %c0_20] : memref<4x1xf32, #tpu.memory_space<vmem>>, vector<4x1xf32>
      %cst_21 = arith.constant dense<0.000000e+00> : vector<1x1xf32>
      %20 = tpu.matmul %17, %19, %cst_21 {dimension_numbers = #tpu.dot_dimension_numbers<[1], [0], [0], [1], [0, 0, 1, 1], [], []>} : vector<1x4xf32>, vector<4x1xf32>, vector<1x1xf32> -> vector<1x1xf32>
      %cst_22 = arith.constant 0.000000e+00 : f32
      %21 = vector.broadcast %cst_22 : f32 to vector<1x1xf32>
      %22 = arith.maximumf %20, %21 : vector<1x1xf32>
      %c0_23 = arith.constant 0 : index
      %c0_24 = arith.constant 0 : index
      %23 = vector.load %arg3[%c0_23, %c0_24] : memref<4x1xf32, #tpu.memory_space<vmem>>, vector<4x1xf32>
      %cst_25 = arith.constant dense<0.000000e+00> : vector<1x1xf32>
      %24 = tpu.matmul %18, %23, %cst_25 {dimension_numbers = #tpu.dot_dimension_numbers<[1], [0], [0], [1], [0, 0, 1, 1], [], []>} : vector<1x4xf32>, vector<4x1xf32>, vector<1x1xf32> -> vector<1x1xf32>
      %cst_26 = arith.constant 0.000000e+00 : f32
      %25 = vector.broadcast %cst_26 : f32 to vector<1x1xf32>
      %26 = arith.maximumf %24, %25 : vector<1x1xf32>
      %27 = arith.addf %22, %26 : vector<1x1xf32>
      %c0_27 = arith.constant 0 : index
      %c0_28 = arith.constant 0 : index
      %28 = vector.load %arg4[%c0_27, %c0_28] : memref<1x4xf32, #tpu.memory_space<vmem>>, vector<1x4xf32>
      %cst_29 = arith.constant dense<0.000000e+00> : vector<1x4xf32>
      %29 = tpu.matmul %27, %28, %cst_29 {dimension_numbers = #tpu.dot_dimension_numbers<[1], [0], [0], [1], [0, 0, 1, 1], [], []>} : vector<1x1xf32>, vector<1x4xf32>, vector<1x4xf32> -> vector<1x4xf32>
      %30 = arith.negf %29 : vector<1x4xf32>
      %31 = math.exp %30 : vector<1x4xf32>
      %cst_30 = arith.constant 1.000000e+00 : f32
      %32 = vector.broadcast %cst_30 : f32 to vector<1x4xf32>
      %33 = arith.addf %32, %31 : vector<1x4xf32>
      %34 = arith.divf %32, %33 : vector<1x4xf32>
      %35 = vector.shape_cast %34 : vector<1x4xf32> to vector<1x1x4xf32>
      %c0_31 = arith.constant 0 : index
      %c0_32 = arith.constant 0 : index
      %c0_33 = arith.constant 0 : index
      %36 = vector.load %arg5[%c0_31, %c0_32, %c0_33] : memref<1x1x4xf32, #tpu.memory_space<vmem>>, vector<1x1x4xf32>
      tpu.vector_store %arg5[%c0_31, %c0_32, %c0_33], %35 {strides = array<i32>} : memref<1x1x4xf32, #tpu.memory_space<vmem>>, vector<1x1x4xf32>,
    } else {
    }
    return
  }
  func.func @transform_0(%arg0: i32, %arg1: i32) -> (i32, i32, i32) {
    %c0_i32 = arith.constant 0 : i32
    %c0_i32_0 = arith.constant 0 : i32
    return %arg0, %c0_i32, %arg1 : i32, i32, i32
  }
  func.func @transform_1(%arg0: i32, %arg1: i32) -> (i32, i32) {
    %c0_i32 = arith.constant 0 : i32
    %c0_i32_0 = arith.constant 0 : i32
    %c0_i32_1 = arith.constant 0 : i32
    return %c0_i32, %c0_i32_0 : i32, i32
  }
  func.func @transform_2(%arg0: i32, %arg1: i32) -> (i32, i32) {
    %c0_i32 = arith.constant 0 : i32
    %c0_i32_0 = arith.constant 0 : i32
    %c0_i32_1 = arith.constant 0 : i32
    return %c0_i32, %c0_i32_0 : i32, i32
  }
  func.func @transform_3(%arg0: i32, %arg1: i32) -> (i32, i32, i32) {
    %c0_i32 = arith.constant 0 : i32
    %c0_i32_0 = arith.constant 0 : i32
    %c0_i32_1 = arith.constant 0 : i32
    return %arg0, %c0_i32, %c0_i32_0 : i32, i32, i32
  }
}

</mosaic_0001>

<llo_original>
// kernel: tpu_custom_call.1
$region0: #{tpu_custom_call.1}
  #allocation0 [shape = 'u32[]', space=smem, size = 0x4, offset = 0x4, fixed_abs, tag = 'smem constant byte address 0x4 - core index']
  #allocation1 [shape = 'u32[72,128]{1,0:T(1,128)}', space=vmem, size = 0x9000, scoped, tag = 'internal scratch']
  #allocation2 [shape = 'f32[1,4]{1,0:T(1,128)}', space=vmem, size = 0x200, scoped, tag = 'scratch operand']
  #allocation3 [shape = 'f32[1,4]{1,0:T(1,128)}', space=vmem, size = 0x200, scoped, tag = 'scratch operand']
  %s0 = inlined_call_operand.hbm [shape: f32[2,4,256], index: 0, kind: input, shape index: {}]
  %s1 = inlined_call_operand.vmem [shape: f32[4,1], index: 1, kind: input, shape index: {}]
  %s2 = inlined_call_operand.vmem [shape: f32[1,4], index: 2, kind: input, shape index: {}]
  %s3 = inlined_call_operand.hbm [shape: f32[2,1,4], index: 3, kind: output, shape index: {}]
  %s4 = sld [smem:[#allocation0]]
  $region57: #{tpu_custom_call.1} parent=0
    _
  %s6 = ssub.s32 1, %s4
  %s7 = scalar_select 0, %s6, %s4
  $region1: #{tpu_custom_call.1} parent=0
    #allocation4 [shape = 'u8[8192]{0}', space=vmem, size = 0x2000, scoped, tag = 'input window, operand 0']
    #allocation5 [shape = 's32[2]{0}', space=sflag, size = 0x8, scoped, tag = 'scoped memory for tpu_custom_call.1']
    #allocation6 [shape = 's32[2]{0}', space=sflag, size = 0x8, scoped, tag = 'scoped memory for tpu_custom_call.1']
    #allocation7 [shape = 'u8[1024]{0}', space=vmem, size = 0x400, scoped, tag = 'output window, operand 0']
    %8 = vsyncpa [#allocation5], 0
    %s9 = scalar_lea.sflag [#allocation5], 1
    %10 = vsyncpa %s9, 0
    %11 = vsyncpa [#allocation6], 0
    %s12 = scalar_lea.sflag [#allocation6], 1
    %13 = vsyncpa %s12, 0
    loop: start=0, step=1, limit=4
    $region2: #{tpu_custom_call.1} parent=1 // loop_pre_header
      _
    $region3: #{tpu_custom_call.1} parent=1 // loop_header
      %s15 = sphi 0, %s19
      %p16 = scmp.ge.s32.totalorder %s15, 4
      %s22 = sphi 0, %s34
      %s23 = sphi 0, %s30
      %s24 = sphi 0, %s22
      %s25 = sphi 0, %s23
      %s26 = sphi 0, %s24
      %s27 = sphi 0, %s25
      %s39 = sphi 0, %s41
      %s42 = sphi 0, %s39
      %s43 = sphi 0, %s42
      %s59 = sphi 0, %s43
      %s63 = sphi 0, %s63
      %s65 = sphi 0, %s63
      %s66 = sphi 0, %s65
      %s80 = sphi 0, %s66
      %s84 = sphi 0, %s84
      %s86 = sphi 0, %s84
      %s87 = sphi 0, %s86
      %s101 = sphi 0, %s87
      %s107 = sphi 0, %s109
      %s110 = sphi 0, %s107
      %s111 = sphi 0, %s110
      %s127 = sphi 0, %s111
    $region4: #{tpu_custom_call.1} parent=1 // loop_header_branch
      %18 = sbr.rel (%p16) target = $region8
    $region5: #{tpu_custom_call.1} parent=1 // loop_body
      %s20 = ssub.s32 %s15, 1
      %s21 = ssub.s32 %s15, 2
      %s28 = sadd.s32 1, %s23
      %p29 = scmp.ge.s32.totalorder %s28, 1
      %s30 = scalar_select %p29, 0, %s28
      %s31 = sadd.s32 1, %s22
      %s32 = scalar_select %p29, %s31, %s22
      %p33 = scmp.ge.s32.totalorder %s32, 2
      %s34 = scalar_select %p33, 0, %s32
      %s35 = ssub.s32 %s22, %s34
      %s36 = ssub.s32 %s23, %s30
      %s37 = sor.u32 %s35, %s36
      %p38 = scmp.eq.s32.totalorder %s37, 0
      %s40 = sadd.s32 %s39, 1
      %s41 = scalar_select %p38, %s39, %s40
      %p44 = pneg %p38
      %p45 = scmp.eq.s32.totalorder %s15, 1
      %p46 = por %p44, %p45
      %p47 = scmp.ne.s32.totalorder %s39, %s42
      %p48 = scmp.eq.s32.totalorder %s15, 0
      %p49 = por %p47, %p48
      %p50 = scmp.ne.s32.totalorder %s39, %s42
      %p51 = scmp.eq.s32.totalorder %s20, 1
      %p52 = por %p50, %p51
      %p53 = scmp.ne.s32.totalorder %s42, %s43
      %p54 = scmp.eq.s32.totalorder %s20, 0
      %p55 = por %p53, %p54
      %p56 = scmp.ne.s32.totalorder %s42, %s43
      %p57 = scmp.eq.s32.totalorder %s21, 1
      %p58 = por %p56, %p57
      %p60 = scmp.ne.s32.totalorder %s43, %s59
      %p61 = scmp.eq.s32.totalorder %s21, 0
      %p62 = por %p60, %p61
      %s64 = sadd.s32 %s63, 1
      %p67 = scmp.eq.s32.totalorder %s15, 1
      %p68 = scmp.ne.s32.totalorder %s63, %s65
      %p69 = scmp.eq.s32.totalorder %s15, 0
      %p70 = por %p68, %p69
      %p71 = scmp.ne.s32.totalorder %s63, %s65
      %p72 = scmp.eq.s32.totalorder %s20, 1
      %p73 = por %p71, %p72
      %p74 = scmp.ne.s32.totalorder %s65, %s66
      %p75 = scmp.eq.s32.totalorder %s20, 0
      %p76 = por %p74, %p75
      %p77 = scmp.ne.s32.totalorder %s65, %s66
      %p78 = scmp.eq.s32.totalorder %s21, 1
      %p79 = por %p77, %p78
      %p81 = scmp.ne.s32.totalorder %s66, %s80
      %p82 = scmp.eq.s32.totalorder %s21, 0
      %p83 = por %p81, %p82
      %s85 = sadd.s32 %s84, 1
      %p88 = scmp.eq.s32.totalorder %s15, 1
      %p89 = scmp.ne.s32.totalorder %s84, %s86
      %p90 = scmp.eq.s32.totalorder %s15, 0
      %p91 = por %p89, %p90
      %p92 = scmp.ne.s32.totalorder %s84, %s86
      %p93 = scmp.eq.s32.totalorder %s20, 1
      %p94 = por %p92, %p93
      %p95 = scmp.ne.s32.totalorder %s86, %s87
      %p96 = scmp.eq.s32.totalorder %s20, 0
      %p97 = por %p95, %p96
      %p98 = scmp.ne.s32.totalorder %s86, %s87
      %p99 = scmp.eq.s32.totalorder %s21, 1
      %p100 = por %p98, %p99
      %p102 = scmp.ne.s32.totalorder %s87, %s101
      %p103 = scmp.eq.s32.totalorder %s21, 0
      %p104 = por %p102, %p103
      %s105 = ssub.s32 %s22, %s34
      %p106 = scmp.eq.s32.totalorder %s105, 0
      %s108 = sadd.s32 %s107, 1
      %s109 = scalar_select %p106, %s107, %s108
      %p112 = pneg %p106
      %p113 = scmp.eq.s32.totalorder %s15, 1
      %p114 = por %p112, %p113
      %p115 = scmp.ne.s32.totalorder %s107, %s110
      %p116 = scmp.eq.s32.totalorder %s15, 0
      %p117 = por %p115, %p116
      %p118 = scmp.ne.s32.totalorder %s107, %s110
      %p119 = scmp.eq.s32.totalorder %s20, 1
      %p120 = por %p118, %p119
      %p121 = scmp.ne.s32.totalorder %s110, %s111
      %p122 = scmp.eq.s32.totalorder %s20, 0
      %p123 = por %p121, %p122
      %p124 = scmp.ne.s32.totalorder %s110, %s111
      %p125 = scmp.eq.s32.totalorder %s21, 1
      %p126 = por %p124, %p125
      %p128 = scmp.ne.s32.totalorder %s111, %s127
      %p129 = scmp.eq.s32.totalorder %s21, 0
      %p130 = por %p128, %p129
      %p131 = scmp.le.s32.totalorder 1, %s15
      %p132 = scmp.lt.s32.totalorder %s15, 3
      %p133 = pnand %p131, %p132
      %p134 = pneg %p133
      // Predicated region
      $region9: #{tpu_custom_call.1} parent=5 // pred_check
        _
      $region10: #{tpu_custom_call.1} parent=5 // pred_check_branch
        %136 = sbr.rel (%p133) target = $region12
      $region11: #{tpu_custom_call.1} parent=5 // pred_region
        %s137 = ssub.s32 %s15, 1
        // Predicated region
        $region13: #{tpu_custom_call.1} parent=11 // pred_check
          %p138 = pneg %p76
        $region14: #{tpu_custom_call.1} parent=11 // pred_check_branch
          %140 = sbr.rel (%p138) target = $region16
        $region15: #{tpu_custom_call.1} parent=11 // pred_region
          _
        $region16: #{tpu_custom_call.1} parent=11 // pred_fallthru
          _
        // Predicated region
        $region17: #{tpu_custom_call.1} parent=11 // pred_check
          %p141 = pneg %p97
        $region18: #{tpu_custom_call.1} parent=11 // pred_check_branch
          %143 = sbr.rel (%p141) target = $region20
        $region19: #{tpu_custom_call.1} parent=11 // pred_region
          _
        $region20: #{tpu_custom_call.1} parent=11 // pred_fallthru
          _
      $region12: #{tpu_custom_call.1} parent=5 // pred_fallthru
        _
      %p144 = scmp.lt.s32.totalorder %s15, 2
      // Predicated region
      $region21: #{tpu_custom_call.1} parent=5 // pred_check
        %p145 = pneg %p144
      $region22: #{tpu_custom_call.1} parent=5 // pred_check_branch
        %147 = sbr.rel (%p145) target = $region24
      $region23: #{tpu_custom_call.1} parent=5 // pred_region
        // Predicated region
        $region25: #{tpu_custom_call.1} parent=23 // pred_check
          %p148 = pneg %p49
        $region26: #{tpu_custom_call.1} parent=23 // pred_check_branch
          %150 = sbr.rel (%p148) target = $region28
        $region27: #{tpu_custom_call.1} parent=23 // pred_region
          %s151 = sand.u32 %s39, 1
          %s152 = scalar_lea.sflag [#allocation5], %s151
          %s153 = sand.u32 %s39, 1
          %s154 = smul.addr %s153, 8
          %s155 = scalar_lea.vmem [#allocation4], %s154
          %s156 = smul.u32 2, %s23
          %158 = vsyncadd %s152, 0
          %s159 = smul.addr %s22, 2
          %s160 = sadd.s32 %s156, %s159
          %s161 = smul.addr %s160, 4
          %s162 = scalar_lea.hbm %s0, %s161
          %s164 = sshll.u32 %s162, 4
          %s165 = int_to_ptr.hbm [resolvable:$true] %s164
          %s166 = sshll.u32 %s155, 4
          %s167 = int_to_ptr.vmem [resolvable:$true] %s166
          %169 = dma.hbm_to_vmem [thread:$0]  %s165, 128, %s167, %s152
        $region28: #{tpu_custom_call.1} parent=23 // pred_fallthru
          _
      $region24: #{tpu_custom_call.1} parent=5 // pred_fallthru
        _
      %p170 = scmp.le.s32.totalorder 1, %s15
      %p171 = scmp.lt.s32.totalorder %s15, 3
      %p172 = pnand %p170, %p171
      %p173 = pneg %p172
      // Predicated region
      $region29: #{tpu_custom_call.1} parent=5 // pred_check
        _
      $region30: #{tpu_custom_call.1} parent=5 // pred_check_branch
        %175 = sbr.rel (%p172) target = $region32
      $region31: #{tpu_custom_call.1} parent=5 // pred_region
        %s176 = ssub.s32 %s15, 1
        %s177 = sand.u32 %s42, 1
        %s178 = scalar_lea.sflag [#allocation5], %s177
        %s179 = sand.u32 %s42, 1
        %s180 = smul.addr %s179, 8
        %s181 = scalar_lea.vmem [#allocation4], %s180
        // Predicated region
        $region33: #{tpu_custom_call.1} parent=31 // pred_check
          %p182 = pneg %p55
        $region34: #{tpu_custom_call.1} parent=31 // pred_check_branch
          %184 = sbr.rel (%p182) target = $region36
        $region35: #{tpu_custom_call.1} parent=31 // pred_region
          %186 = dma.done %s178, 128
        $region36: #{tpu_custom_call.1} parent=31 // pred_fallthru
          _
        %s187 = sand.u32 %s42, 1
        %s188 = scalar_lea.sflag [#allocation5], %s187
        %s189 = sand.u32 %s42, 1
        %s190 = smul.addr %s189, 8
        %s191 = scalar_lea.vmem [#allocation4], %s190
        %p192 = pneg %p55
        %p193 = pneg %p52
        %p194 = pneg %p76
        %p195 = pneg %p73
        %p196 = pneg %p97
        %p197 = pneg %p94
        %p198 = pneg %p123
        %p199 = pneg %p120
        %s200 = sand.u32 %s110, 1
        %s201 = scalar_lea.sflag [#allocation6], %s200
        %s202 = sand.u32 %s110, 1
        %s203 = scalar_lea.vmem [#allocation7], %s202
        %s204 = smul.u32 2, %s25
        %p205 = scmp.eq.s32.totalorder %s25, 0
        // Predicated region
        $region37: #{tpu_custom_call.1} parent=31 // pred_check
          %p206 = pneg %p205
        $region38: #{tpu_custom_call.1} parent=31 // pred_check_branch
          %208 = sbr.rel (%p206) target = $region40
        $region39: #{tpu_custom_call.1} parent=31 // pred_region
          %vm209 = vcmask 24576
          %210 = vst.msk [vmem:[#allocation2] sm:$0x1] %vm209, 0.0
          %211 = vst.msk [vmem:[#allocation3] sm:$0x1] %vm209, -inf
        $region40: #{tpu_custom_call.1} parent=31 // pred_fallthru
          _
        %v212 = vld [vmem:[%s181] sm:$0xff]
        %v213 = vld [vmem:[#allocation2] sm:$0x1]
        %215 = vst [vmem:[#allocation1] ss:$2 sm:$0xff] %v212
        %v216 = vld.sshfl [vmem:[#allocation1] sm:$0xff pattern:$0x75316420]
        %v217 = vld.sshfl [vmem:[#allocation1 + $0x8] sm:$0xff pattern:$0x75316420]
        %vm220 = vcmask 1043456
        %v221 = vsel %vm220, %v216, 0.0
        %v222 = vsel %vm220, %v217, 0.0
        %v223 = vadd.f32 %v221, %v222
        %224 = vadd.xlane.f32.xlu0 %v223
        %v225 = vpop.xlane.xlu0 %224
        %v227 = vperm.slane %v225, 0
        %v228 = vperm.slane %v225, 1
        %v229 = vperm.slane %v225, 2
        %v230 = vperm.slane %v225, 3
        %231 = vst [vmem:[#allocation1] ss:$9 sm:$0xff] %v227
        %s232 = scalar_lea.vmem [#allocation1], 1
        %233 = vst [vmem:[%s232] ss:$9 sm:$0xff] %v228
        %s234 = scalar_lea.vmem [#allocation1], 2
        %235 = vst [vmem:[%s234] ss:$9 sm:$0xff] %v229
        %s236 = scalar_lea.vmem [#allocation1], 3
        %237 = vst [vmem:[%s236] ss:$9 sm:$0xff] %v230
        %v238 = vld [vmem:[#allocation1] sm:$0xff]
        %239 = vset.pattern.permute.xlu0 0
        %240 = vperm.xlu0 %239, %v238
        %v241 = vpop.permute.xlu0 %240
        %v242 = vlaneseq
        %v243 = vand.u32 %v242, 127
        %v244 = vperm.slane %v241, %v243
        %v246 = vadd.f32 %v213, %v244
        %vm247 = vcmask 24576
        %248 = vst.msk [vmem:[#allocation2] sm:$0x1] %vm247, %v246
        %v249 = vld [vmem:[#allocation3] sm:$0x1]
        %250 = vst [vmem:[#allocation1] ss:$2 sm:$0xff] %v212
        %v251 = vld.sshfl [vmem:[#allocation1] sm:$0xff pattern:$0x75316420]
        %v252 = vld.sshfl [vmem:[#allocation1 + $0x8] sm:$0xff pattern:$0x75316420]
        %v255 = vsel %vm220, %v251, -inf
        %v256 = vsel %vm220, %v252, -inf
        %v257 = vmax.f32 %v255, %v256
        %258 = vmax.xlane.f32.xlu0 %v257
        %v259 = vpop.xlane.xlu0 %258
        %v261 = vperm.slane %v259, 0
        %v262 = vperm.slane %v259, 1
        %v263 = vperm.slane %v259, 2
        %v264 = vperm.slane %v259, 3
        %265 = vst [vmem:[#allocation1] ss:$9 sm:$0xff] %v261
        %s266 = scalar_lea.vmem [#allocation1], 1
        %267 = vst [vmem:[%s266] ss:$9 sm:$0xff] %v262
        %s268 = scalar_lea.vmem [#allocation1], 2
        %269 = vst [vmem:[%s268] ss:$9 sm:$0xff] %v263
        %s270 = scalar_lea.vmem [#allocation1], 3
        %271 = vst [vmem:[%s270] ss:$9 sm:$0xff] %v264
        %v272 = vld [vmem:[#allocation1] sm:$0xff]
        %273 = vset.pattern.permute.xlu0 0
        %274 = vperm.xlu0 %273, %v272
        %v275 = vpop.permute.xlu0 %274
        %v276 = vperm.slane %v275, %v243
        %v278 = vmax.f32 %v249, %v276
        %279 = vst.msk [vmem:[#allocation3] sm:$0x1] %vm247, %v278
        // Predicated region
        $region41: #{tpu_custom_call.1} parent=31 // pred_check
          %p280 = pneg %p205
        $region42: #{tpu_custom_call.1} parent=31 // pred_check_branch
          %282 = sbr.rel (%p280) target = $region44
        $region43: #{tpu_custom_call.1} parent=31 // pred_region
          %v283 = vld [vmem:[#allocation2] sm:$0x1]
          %v284 = vmul.f32 %v283, 0.00390625
          %v285 = vld [vmem:[#allocation3] sm:$0x1]
          %v286 = vld [vmem:[%s1] sm:$0xf]
          %vm287 = vcmask 31744
          %v289 = vsel %vm287, %v284, 0
          %v292 = vsel %vm220, %v286, 0
          %294 = vmatpush.msra.mxu0 0.0
          %295 = vmatpush.msra.mxu0 0.0
          %296 = vmatpush.msra.mxu0 0.0
          %297 = vmatpush.msra.mxu0 0.0
          %298 = vmatpush.msra.mxu0 0.0
          %299 = vmatpush.msra.mxu0 0.0
          %300 = vmatpush.msra.mxu0 0.0
          %301 = vmatpush.msra.mxu0 0.0
          %302 = vmatpush.msra.mxu0 0.0
          %303 = vmatpush.msra.mxu0 0.0
          %304 = vmatpush.msra.mxu0 0.0
          %305 = vmatpush.msra.mxu0 0.0
          %306 = vmatpush.msra.mxu0 0.0
          %307 = vmatpush.msra.mxu0 0.0
          %308 = vmatpush.msra.mxu0 0.0
          %309 = vmatpush.msra.mxu0 %v292
          %310 = vmatmul.f32.gmra.mxu0 %v289
          %v311 = vpop.f32.mrf.mxu0
          %v312 = vadd.f32 0.0, %v311
          %313 = vdwg.mxu0
          %v314 = vmax.f32 %v312, 0.0
          %v316 = vsel %vm287, %v285, 0
          %318 = vmatpush.msra.mxu0 0.0
          %319 = vmatpush.msra.mxu0 0.0
          %320 = vmatpush.msra.mxu0 0.0
          %321 = vmatpush.msra.mxu0 0.0
          %322 = vmatpush.msra.mxu0 0.0
          %323 = vmatpush.msra.mxu0 0.0
          %324 = vmatpush.msra.mxu0 0.0
          %325 = vmatpush.msra.mxu0 0.0
          %326 = vmatpush.msra.mxu0 0.0
          %327 = vmatpush.msra.mxu0 0.0
          %328 = vmatpush.msra.mxu0 0.0
          %329 = vmatpush.msra.mxu0 0.0
          %330 = vmatpush.msra.mxu0 0.0
          %331 = vmatpush.msra.mxu0 0.0
          %332 = vmatpush.msra.mxu0 0.0
          %333 = vmatpush.msra.mxu0 %v292
          %334 = vmatmul.f32.gmra.mxu0 %v316
          %v335 = vpop.f32.mrf.mxu0
          %v336 = vadd.f32 0.0, %v335
          %337 = vdwg.mxu0
          %v338 = vmax.f32 %v336, 0.0
          %v339 = vadd.f32 %v314, %v338
          %v340 = vld [vmem:[%s2] sm:$0x1]
          %vm341 = vcmask 7168
          %v343 = vsel %vm341, %v339, 0
          %vm345 = vcmask 1040384
          %v347 = vsel %vm345, %v340, 0
          %349 = vmatpush.msra.mxu0 0.0
          %350 = vmatpush.msra.mxu0 0.0
          %351 = vmatpush.msra.mxu0 0.0
          %352 = vmatpush.msra.mxu0 0.0
          %353 = vmatpush.msra.mxu0 0.0
          %354 = vmatpush.msra.mxu0 0.0
          %355 = vmatpush.msra.mxu0 0.0
          %356 = vmatpush.msra.mxu0 0.0
          %357 = vmatpush.msra.mxu0 0.0
          %358 = vmatpush.msra.mxu0 0.0
          %359 = vmatpush.msra.mxu0 0.0
          %360 = vmatpush.msra.mxu0 0.0
          %361 = vmatpush.msra.mxu0 0.0
          %362 = vmatpush.msra.mxu0 0.0
          %363 = vmatpush.msra.mxu0 0.0
          %364 = vmatpush.msra.mxu0 %v347
          %365 = vmatmul.f32.gmra.mxu0 %v343
          %v366 = vpop.f32.mrf.mxu0
          %v367 = vadd.f32 0.0, %v366
          %368 = vdwg.mxu0
          %v369 = vxor.u32 %v367, 2147483648
          %v370 = vmul.f32 %v369, 1.442695
          %v371 = vpow.pop %v370
          %v372 = vadd.f32 %v371, 1.0
          %v373 = vrcp.pop %v372
          %v374 = vmul.f32 %v372, %v373
          %v375 = vsub.f32 1.0, %v374
          %v376 = vmul.f32 %v373, %v375
          %v377 = vadd.f32 %v373, %v376
          %vm378 = vweird.f32 %v372
          %vm379 = vweird.f32 %v373
          %vm380 = vmor %vm378, %vm379
          %v381 = vsel %vm380, %v373, %v377
          %v382 = vand.u32 2147483647, %v372
          %vm383 = vcmp.eq.f32.partialorder %v382, 8.507059e+37
          %v384 = vand.u32 %v372, 2147483648
          %v385 = vor.u32 1.1754944e-38, %v384
          %v386 = vsel %vm383, %v385, %v381
          %v387 = vmul.f32 1.0, %v386
          %388 = vst.msk [vmem:[%s203] sm:$0x1] %vm247, %v387
        $region44: #{tpu_custom_call.1} parent=31 // pred_fallthru
          _
        %s389 = sand.u32 %s110, 1
        %s390 = scalar_lea.sflag [#allocation6], %s389
        %s391 = sand.u32 %s110, 1
        %s392 = scalar_lea.vmem [#allocation7], %s391
        // Predicated region
        $region45: #{tpu_custom_call.1} parent=31 // pred_check
          %p393 = pneg %p120
        $region46: #{tpu_custom_call.1} parent=31 // pred_check_branch
          %395 = sbr.rel (%p393) target = $region48
        $region47: #{tpu_custom_call.1} parent=31 // pred_region
          %397 = vsyncadd %s390, 0
          %s398 = scalar_lea.hbm %s3, %s24
          %s400 = sshll.u32 %s392, 4
          %s401 = int_to_ptr.vmem [resolvable:$true] %s400
          %s402 = sshll.u32 %s398, 4
          %s403 = int_to_ptr.hbm [resolvable:$true] %s402
          %405 = dma.vmem_to_hbm [thread:$0]  %s401, 16, %s403, %s390
        $region48: #{tpu_custom_call.1} parent=31 // pred_fallthru
          _
      $region32: #{tpu_custom_call.1} parent=5 // pred_fallthru
        _
      %p406 = scmp.le.s32.totalorder 2, %s15
      // Predicated region
      $region49: #{tpu_custom_call.1} parent=5 // pred_check
        %p407 = pneg %p406
      $region50: #{tpu_custom_call.1} parent=5 // pred_check_branch
        %409 = sbr.rel (%p407) target = $region52
      $region51: #{tpu_custom_call.1} parent=5 // pred_region
        %s410 = ssub.s32 %s15, 2
        // Predicated region
        $region53: #{tpu_custom_call.1} parent=51 // pred_check
          %p411 = pneg %p126
        $region54: #{tpu_custom_call.1} parent=51 // pred_check_branch
          %413 = sbr.rel (%p411) target = $region56
        $region55: #{tpu_custom_call.1} parent=51 // pred_region
          %s414 = sand.u32 %s111, 1
          %s415 = scalar_lea.sflag [#allocation6], %s414
          %s416 = sand.u32 %s111, 1
          %s417 = scalar_lea.vmem [#allocation7], %s416
          %419 = dma.done %s415, 16
        $region56: #{tpu_custom_call.1} parent=51 // pred_fallthru
          _
      $region52: #{tpu_custom_call.1} parent=5 // pred_fallthru
        _
    $region6: #{tpu_custom_call.1} parent=1 // loop_footer
      %s19 = sadd.s32 1, %s15
    $region7: #{tpu_custom_call.1} parent=1 // loop_footer_branch
      %14 = sbr.rel target = $region3
    $region8: #{tpu_custom_call.1} parent=1 // loop_exit
      _
    %420 = vsyncpa [#allocation5], 1
    %s421 = scalar_lea.sflag [#allocation5], 1
    %422 = vsyncpa %s421, 1
    %423 = vsyncpa [#allocation6], 1
    %s424 = scalar_lea.sflag [#allocation6], 1
    %425 = vsyncpa %s424, 1

</llo_original>
